<compile_context>
chip_gen: v7x
topology: tpu7x:2x2x1
jax: 0.10.0
libtpu: 0.0.40
codegen_flags: <defaults>
</compile_context>

<pallas_src>
import jax
import jax.numpy as jnp
from jax.experimental import pallas as pl
from jax.experimental.pallas import tpu as pltpu


def critic_kernel(x_ref, w1_ref, w2_ref, p_ref, o_ref):
    # p_ref rows: 0 = b1, 1 = b2, 2 = w3 (as a row), 3 = b3 (broadcast), 4..7 = 0.
    x = x_ref[...]                       # (TM, S)
    b1 = p_ref[0:1, :]                   # (1, H)
    b2 = p_ref[1:2, :]                   # (1, H)
    b3 = p_ref[3:4, 0:1]                 # (1, 1)

    # Two MXU matmuls; biases broadcast over sublanes, tanh on the EUP.
    h1 = jnp.tanh(jnp.dot(x, w1_ref[...], preferred_element_type=jnp.float32) + b1)
    h2 = jnp.tanh(jnp.dot(h1, w2_ref[...], preferred_element_type=jnp.float32) + b2)

    # Final layer + output relayout in one MXU pass: contract the packed (8, H)
    # param rows with h2 (TM, H) over H -> (8, TM). Row 2 (= w3) is the critic
    # value per batch row, already lane-dense; the other rows are free MXU slack.
    res = jax.lax.dot_general(
        p_ref[...], h2, (((1,), (1,)), ((), ())),
        preferred_element_type=jnp.float32)                   # (8, TM)

    # Lane-dense compact store: (1, TM) row, wrapper maps lane j of tile i back
    # to batch row i*TM + j.
    o_ref[...] = (res[2:3, :] + b3).astype(o_ref.dtype)


def critic_forward(x, w1, b1, w2, b2, w3, b3, *, tm=512):
    B, state_dim = x.shape
    hidden = w1.shape[1]

    # Sublane-align the tile and never exceed the (rounded-up) batch, so tiny
    # batches don't overcompute and blocks never exceed the array extent.
    b8 = ((B + 7) // 8) * 8
    tm = max(8, (tm // 8) * 8)
    tm = min(tm, b8)

    # Common large-batch path (B % 8 == 0): no pad, no extra HBM round trip.
    # Ragged last tiles (B % tm != 0) are handled by Pallas boundary blocks;
    # garbage tail rows are computed independently and sliced off below.
    x_in = x if B == b8 else jnp.pad(x, ((0, b8 - B), (0, 0)))

    n_tiles = pl.cdiv(b8, tm)

    # Pack small operands into one (8, hidden) VMEM block: 4 input DMAs total,
    # and an MXU-friendly 8-row LHS for the final contraction.
    params = jnp.concatenate(
        [
            b1.reshape(1, hidden),                              # row 0: b1
            b2.reshape(1, hidden),                              # row 1: b2
            w3.T,                                               # row 2: w3 as a row
            jnp.broadcast_to(b3.reshape(1, 1), (1, hidden)),    # row 3: b3
            jnp.zeros((4, hidden), jnp.float32),                # rows 4..7: padding
        ],
        axis=0,
    )  # (8, hidden)

    out = pl.pallas_call(
        critic_kernel,
        out_shape=jax.ShapeDtypeStruct((n_tiles, tm), jnp.float32),
        grid=(n_tiles,),
        in_specs=[
            pl.BlockSpec((tm, state_dim), lambda i: (i, 0)),      # x: tiled over batch
            pl.BlockSpec((state_dim, hidden), lambda i: (0, 0)),  # w1: VMEM-resident
            pl.BlockSpec((hidden, hidden), lambda i: (0, 0)),     # w2: VMEM-resident
            pl.BlockSpec((8, hidden), lambda i: (0, 0)),          # packed b1/b2/w3/b3
        ],
        out_specs=pl.BlockSpec((1, tm), lambda i: (i, 0)),        # compact, lane-dense
        compiler_params=pltpu.CompilerParams(
            dimension_semantics=("parallel",),   # batch axis -> both TCs on v7x
        ),
    )(x_in, w1, w2, params)

    # tile i, lane j  ->  batch row i*tm + j
    return out.reshape(n_tiles * tm, 1)[:B]


def init_linear_params(key, in_dim, out_dim):
    # Deterministic init mimicking PyTorch nn.Linear default (U[-1/sqrt(in), 1/sqrt(in)]).
    kw, kb = jax.random.split(key)
    bound = 1.0 / jnp.sqrt(jnp.float32(in_dim))
    # Stored as [in, out] (transposed vs. PyTorch's [out, in]) so the kernel does x @ W.
    w = jax.random.uniform(kw, (in_dim, out_dim), jnp.float32, -bound, bound)
    b = jax.random.uniform(kb, (1, out_dim), jnp.float32, -bound, bound)
    return w, b


if __name__ == "__main__":
    state_dim = 16
    hidden_dim = 64
    batch = 2

    root = jax.random.PRNGKey(0)
    kx, k1, k2, k3 = jax.random.split(root, 4)

    x = jax.random.normal(kx, (batch, state_dim), jnp.float32)
    w1, b1 = init_linear_params(k1, state_dim, hidden_dim)
    w2, b2 = init_linear_params(k2, hidden_dim, hidden_dim)
    w3, b3 = init_linear_params(k3, hidden_dim, 1)

    out = critic_forward(x, w1, b1, w2, b2, w3, b3)
    out = jax.block_until_ready(out)

    # Pure-JAX reference (same math as the PyTorch module:
    # Linear-Tanh-Linear-Tanh-Linear).
    ref = jnp.tanh(x @ w1 + b1)
    ref = jnp.tanh(ref @ w2 + b2)
    ref = ref @ w3 + b3

    assert out.shape == (batch, 1)
    assert jnp.allclose(out, ref, atol=1e-5, rtol=1e-5)

    print("KERNEL_OK")
</pallas_src>

<mosaic_0001>
module attributes {stable_mosaic.version = 11 : i64} {
  func.func @critic_kernel(%arg0: i32, %arg1: memref<8x16xf32, #tpu.memory_space<vmem>>, %arg2: memref<16x64xf32, #tpu.memory_space<vmem>>, %arg3: memref<64x64xf32, #tpu.memory_space<vmem>>, %arg4: memref<8x64xf32, #tpu.memory_space<vmem>>, %arg5: memref<1x8xf32, #tpu.memory_space<vmem>>) attributes {dimension_semantics = [#tpu.dimension_semantics<parallel>], iteration_bounds = array<i64: 1>, scalar_prefetch = 0 : i64, scratch_operands = 0 : i64, tpu.core_type = #tpu.core_type<tc>, window_params = [{transform_indices = @transform_0, window_bounds = array<i64: 8, 16>}, {pipeline_mode = #tpu.pipeline_mode<synchronous>, transform_indices = @transform_1, window_bounds = array<i64: 16, 64>}, {pipeline_mode = #tpu.pipeline_mode<synchronous>, transform_indices = @transform_2, window_bounds = array<i64: 64, 64>}, {pipeline_mode = #tpu.pipeline_mode<synchronous>, transform_indices = @transform_3, window_bounds = array<i64: 8, 64>}, {transform_indices = @transform_4, window_bounds = array<i64: 1, 8>}]} {
    %c0 = arith.constant 0 : index
    %c0_0 = arith.constant 0 : index
    %0 = vector.load %arg1[%c0, %c0_0] : memref<8x16xf32, #tpu.memory_space<vmem>>, vector<8x16xf32>
    %c0_1 = arith.constant 0 : index
    %c0_2 = arith.constant 0 : index
    %1 = vector.load %arg4[%c0_1, %c0_2] : memref<8x64xf32, #tpu.memory_space<vmem>>, vector<1x64xf32>
    %c1 = arith.constant 1 : index
    %c0_3 = arith.constant 0 : index
    %2 = vector.load %arg4[%c1, %c0_3] : memref<8x64xf32, #tpu.memory_space<vmem>>, vector<1x64xf32>
    %c3 = arith.constant 3 : index
    %c0_4 = arith.constant 0 : index
    %3 = vector.load %arg4[%c3, %c0_4] : memref<8x64xf32, #tpu.memory_space<vmem>>, vector<1x1xf32>
    %c0_5 = arith.constant 0 : index
    %c0_6 = arith.constant 0 : index
    %4 = vector.load %arg2[%c0_5, %c0_6] : memref<16x64xf32, #tpu.memory_space<vmem>>, vector<16x64xf32>
    %cst = arith.constant dense<0.000000e+00> : vector<8x64xf32>
    %5 = tpu.matmul %0, %4, %cst {dimension_numbers = #tpu.dot_dimension_numbers<[1], [0], [0], [1], [0, 0, 1, 1], [], []>} : vector<8x16xf32>, vector<16x64xf32>, vector<8x64xf32> -> vector<8x64xf32>
    %6 = vector.broadcast %1 : vector<1x64xf32> to vector<8x64xf32>
    %7 = arith.addf %5, %6 : vector<8x64xf32>
    %8 = math.tanh %7 : vector<8x64xf32>
    %c0_7 = arith.constant 0 : index
    %c0_8 = arith.constant 0 : index
    %9 = vector.load %arg3[%c0_7, %c0_8] : memref<64x64xf32, #tpu.memory_space<vmem>>, vector<64x64xf32>
    %cst_9 = arith.constant dense<0.000000e+00> : vector<8x64xf32>
    %10 = tpu.matmul %8, %9, %cst_9 {dimension_numbers = #tpu.dot_dimension_numbers<[1], [0], [0], [1], [0, 0, 1, 1], [], []>} : vector<8x64xf32>, vector<64x64xf32>, vector<8x64xf32> -> vector<8x64xf32>
    %11 = vector.broadcast %2 : vector<1x64xf32> to vector<8x64xf32>
    %12 = arith.addf %10, %11 : vector<8x64xf32>
    %13 = math.tanh %12 : vector<8x64xf32>
    %c0_10 = arith.constant 0 : index
    %c0_11 = arith.constant 0 : index
    %14 = vector.load %arg4[%c0_10, %c0_11] : memref<8x64xf32, #tpu.memory_space<vmem>>, vector<8x64xf32>
    %cst_12 = arith.constant dense<0.000000e+00> : vector<8x8xf32>
    %15 = tpu.matmul %14, %13, %cst_12 {dimension_numbers = #tpu.dot_dimension_numbers<[1], [1], [0], [0], [0, 0, 1, 0], [], []>} : vector<8x64xf32>, vector<8x64xf32>, vector<8x8xf32> -> vector<8x8xf32>
    %16 = vector.extract_strided_slice %15 {offsets = [2, 0], sizes = [1, 8], strides = [1, 1]} : vector<8x8xf32> to vector<1x8xf32>
    %17 = vector.broadcast %3 : vector<1x1xf32> to vector<1x8xf32>
    %18 = arith.addf %16, %17 : vector<1x8xf32>
    %c0_13 = arith.constant 0 : index
    %c0_14 = arith.constant 0 : index
    %19 = vector.load %arg5[%c0_13, %c0_14] : memref<1x8xf32, #tpu.memory_space<vmem>>, vector<1x8xf32>
    tpu.vector_store %arg5[%c0_13, %c0_14], %18 {strides = array<i32>} : memref<1x8xf32, #tpu.memory_space<vmem>>, vector<1x8xf32>,
    return
  }
  func.func @transform_0(%arg0: i32) -> (i32, i32) {
    %c0_i32 = arith.constant 0 : i32
    %c0_i32_0 = arith.constant 0 : i32
    return %arg0, %c0_i32 : i32, i32
  }
  func.func @transform_1(%arg0: i32) -> (i32, i32) {
    %c0_i32 = arith.constant 0 : i32
    %c0_i32_0 = arith.constant 0 : i32
    %c0_i32_1 = arith.constant 0 : i32
    return %c0_i32, %c0_i32_0 : i32, i32
  }
  func.func @transform_2(%arg0: i32) -> (i32, i32) {
    %c0_i32 = arith.constant 0 : i32
    %c0_i32_0 = arith.constant 0 : i32
    %c0_i32_1 = arith.constant 0 : i32
    return %c0_i32, %c0_i32_0 : i32, i32
  }
  func.func @transform_3(%arg0: i32) -> (i32, i32) {
    %c0_i32 = arith.constant 0 : i32
    %c0_i32_0 = arith.constant 0 : i32
    %c0_i32_1 = arith.constant 0 : i32
    return %c0_i32, %c0_i32_0 : i32, i32
  }
  func.func @transform_4(%arg0: i32) -> (i32, i32) {
    %c0_i32 = arith.constant 0 : i32
    %c0_i32_0 = arith.constant 0 : i32
    return %arg0, %c0_i32 : i32, i32
  }
}

</mosaic_0001>

<llo_original>
// kernel: tpu_custom_call.1
$region0: #{tpu_custom_call.1}
  #allocation0 [shape = 'u32[]', space=smem, size = 0x4, offset = 0x4, fixed_abs, tag = 'smem constant byte address 0x4 - core index']
  #allocation1 [shape = 'u32[144,128]{1,0:T(1,128)}', space=vmem, size = 0x12000, scoped, tag = 'internal scratch']
  %s0 = inlined_call_operand.hbm [shape: f32[8,16], index: 0, kind: input, shape index: {}]
  %s1 = inlined_call_operand.hbm [shape: f32[16,64], index: 1, kind: input, shape index: {}]
  %s2 = inlined_call_operand.hbm [shape: f32[64,64], index: 2, kind: input, shape index: {}]
  %s3 = inlined_call_operand.vmem [shape: f32[8,64], index: 3, kind: input, shape index: {}]
  %s4 = inlined_call_operand.hbm [shape: f32[1,8], index: 4, kind: output, shape index: {}]
  %s5 = sld [smem:[#allocation0]]
  $region38: #{tpu_custom_call.1} parent=0
    _
  %s7 = ssub.s32 1, %s5
  %s8 = scalar_select 0, %s7, %s5
  $region1: #{tpu_custom_call.1} parent=0
    #allocation2 [shape = 'u8[4096]{0}', space=vmem, size = 0x1000, scoped, tag = 'input window, operand 0, single buffered']
    #allocation3 [shape = 's32[1]{0}', space=sflag, size = 0x4, scoped, tag = 'scoped memory for tpu_custom_call.1']
    #allocation4 [shape = 's32[1]{0}', space=sflag, size = 0x4, scoped, tag = 'scoped memory for tpu_custom_call.1']
    #allocation5 [shape = 'u8[8192]{0}', space=vmem, size = 0x2000, scoped, tag = 'input window, operand 1, single buffered']
    #allocation6 [shape = 's32[1]{0}', space=sflag, size = 0x4, scoped, tag = 'scoped memory for tpu_custom_call.1']
    #allocation7 [shape = 'u8[32768]{0}', space=vmem, size = 0x8000, scoped, tag = 'input window, operand 2, single buffered']
    #allocation8 [shape = 'u8[512]{0}', space=vmem, size = 0x400, scoped, tag = 'output window, operand 0, single buffered']
    %9 = vsyncpa [#allocation3], 0
    %10 = vsyncpa [#allocation6], 0
    %11 = vsyncpa [#allocation4], 0
    // Predicated region
    $region2: #{tpu_custom_call.1} parent=1 // pred_check
      _
    $region3: #{tpu_custom_call.1} parent=1 // pred_check_branch
      %13 = sbr.rel (0) target = $region5
    $region4: #{tpu_custom_call.1} parent=1 // pred_region
      %s15 = ssub.s32 128, 128
      %16 = vsyncadd [#allocation3], %s15
      %s18 = sshll.u32 [#allocation2], 4
      %s19 = int_to_ptr.vmem [resolvable:$true] %s18
      %21 = dma.hbm_to_vmem [thread:$0]  %s0, 128, %s19, [#allocation3]
    $region5: #{tpu_custom_call.1} parent=1 // pred_fallthru
      _
    // Predicated region
    $region6: #{tpu_custom_call.1} parent=1 // pred_check
      _
    $region7: #{tpu_custom_call.1} parent=1 // pred_check_branch
      %23 = sbr.rel (0) target = $region9
    $region8: #{tpu_custom_call.1} parent=1 // pred_region
      %s25 = ssub.s32 256, 256
      %26 = vsyncadd [#allocation6], %s25
      %s27 = sshll.u32 [#allocation5], 4
      %s28 = int_to_ptr.vmem [resolvable:$true] %s27
      %33 = dma.hbm_to_vmem [thread:$0]  %s1, 256, %s28, [#allocation6], 128, 128, 8
    $region9: #{tpu_custom_call.1} parent=1 // pred_fallthru
      _
    // Predicated region
    $region10: #{tpu_custom_call.1} parent=1 // pred_check
      _
    $region11: #{tpu_custom_call.1} parent=1 // pred_check_branch
      %35 = sbr.rel (0) target = $region13
    $region12: #{tpu_custom_call.1} parent=1 // pred_region
      %s37 = ssub.s32 1024, 1024
      %38 = vsyncadd [#allocation6], %s37
      %s39 = sshll.u32 [#allocation7], 4
      %s40 = int_to_ptr.vmem [resolvable:$true] %s39
      %45 = dma.hbm_to_vmem [thread:$0]  %s2, 1024, %s40, [#allocation6], 128, 128, 8
    $region13: #{tpu_custom_call.1} parent=1 // pred_fallthru
      _
    // Predicated region
    $region14: #{tpu_custom_call.1} parent=1 // pred_check
      _
    $region15: #{tpu_custom_call.1} parent=1 // pred_check_branch
      %47 = sbr.rel (0) target = $region17
    $region16: #{tpu_custom_call.1} parent=1 // pred_region
      _
    $region17: #{tpu_custom_call.1} parent=1 // pred_fallthru
      _
    // Predicated region
    $region18: #{tpu_custom_call.1} parent=1 // pred_check
      _
    $region19: #{tpu_custom_call.1} parent=1 // pred_check_branch
      %49 = sbr.rel (0) target = $region21
    $region20: #{tpu_custom_call.1} parent=1 // pred_region
      %50 = dma.done [#allocation3], 128
    $region21: #{tpu_custom_call.1} parent=1 // pred_fallthru
      _
    // Predicated region
    $region22: #{tpu_custom_call.1} parent=1 // pred_check
      _
    $region23: #{tpu_custom_call.1} parent=1 // pred_check_branch
      %52 = sbr.rel (0) target = $region25
    $region24: #{tpu_custom_call.1} parent=1 // pred_region
      %53 = dma.done [#allocation6], 256
    $region25: #{tpu_custom_call.1} parent=1 // pred_fallthru
      _
    // Predicated region
    $region26: #{tpu_custom_call.1} parent=1 // pred_check
      _
    $region27: #{tpu_custom_call.1} parent=1 // pred_check_branch
      %55 = sbr.rel (0) target = $region29
    $region28: #{tpu_custom_call.1} parent=1 // pred_region
      %56 = dma.done [#allocation6], 1024
    $region29: #{tpu_custom_call.1} parent=1 // pred_fallthru
      _
    %v57 = vld [vmem:[#allocation2] sm:$0xff]
    %v58 = vld [vmem:[%s3] sm:$0x1]
    %v59 = vld [vmem:[%s3 + $0x1] sm:$0x1]
    %v60 = vld [vmem:[%s3 + $0x3] sm:$0x1]
    %v61 = vld [vmem:[#allocation5] sm:$0xff]
    %v62 = vld [vmem:[#allocation5 + $0x8] sm:$0xff]
    %v63 = vlaneseq
    %v64 = vshrl.u32 %v63, 7
    %v65 = vsub.s32 0, %v64
    %v66 = vrot.slane %v58, %v65
    %vm67 = vcmask 130048
    %v69 = vsel %vm67, %v57, 0
    %71 = vmatprep.subr.mxu0 0.0
    %72 = vmatpush1.msra.mxu0 %v61
    %73 = vmatprep.subr.mxu0 0.0
    %74 = vmatpush1.msra.mxu0 %v62
    %75 = vmatprep.subr.mxu0 0.0
    %76 = vmatpush1.msra.mxu0 0.0
    %77 = vmatprep.subr.mxu0 0.0
    %78 = vmatpush1.msra.mxu0 0.0
    %79 = vmatprep.subr.mxu0 0.0
    %80 = vmatpush1.msra.mxu0 0.0
    %81 = vmatprep.subr.mxu0 0.0
    %82 = vmatpush1.msra.mxu0 0.0
    %83 = vmatprep.subr.mxu0 0.0
    %84 = vmatpush1.msra.mxu0 0.0
    %85 = vmatprep.subr.mxu0 0.0
    %86 = vmatpush1.msra.mxu0 0.0
    %87 = vmatprep.subr.mxu0 0.0
    %88 = vmatpush1.msra.mxu0 0.0
    %89 = vmatprep.subr.mxu0 0.0
    %90 = vmatpush1.msra.mxu0 0.0
    %91 = vmatprep.subr.mxu0 0.0
    %92 = vmatpush1.msra.mxu0 0.0
    %93 = vmatprep.subr.mxu0 0.0
    %94 = vmatpush1.msra.mxu0 0.0
    %95 = vmatprep.subr.mxu0 0.0
    %96 = vmatpush1.msra.mxu0 0.0
    %97 = vmatprep.subr.mxu0 0.0
    %98 = vmatpush1.msra.mxu0 0.0
    %99 = vmatprep.subr.mxu0 0.0
    %100 = vmatpush1.msra.mxu0 0.0
    %101 = vmatprep.subr.mxu0 0.0
    %102 = vmatpush1.msra.mxu0 0.0
    %103 = vmatprep.subr.mxu0 0.0
    %104 = vmatpush1.msra.mxu0 0.0
    %105 = vmatprep.subr.mxu0 0.0
    %106 = vmatpush1.msra.mxu0 0.0
    %107 = vmatprep.subr.mxu0 0.0
    %108 = vmatpush1.msra.mxu0 0.0
    %109 = vmatprep.subr.mxu0 0.0
    %110 = vmatpush1.msra.mxu0 0.0
    %111 = vmatprep.subr.mxu0 0.0
    %112 = vmatpush1.msra.mxu0 0.0
    %113 = vmatprep.subr.mxu0 0.0
    %114 = vmatpush1.msra.mxu0 0.0
    %115 = vmatprep.subr.mxu0 0.0
    %116 = vmatpush1.msra.mxu0 0.0
    %117 = vmatprep.subr.mxu0 0.0
    %118 = vmatpush1.msra.mxu0 0.0
    %119 = vmatprep.subr.mxu0 0.0
    %120 = vmatpush1.msra.mxu0 0.0
    %121 = vmatprep.subr.mxu0 0.0
    %122 = vmatpush1.msra.mxu0 0.0
    %123 = vmatprep.subr.mxu0 0.0
    %124 = vmatpush1.msra.mxu0 0.0
    %125 = vmatprep.subr.mxu0 0.0
    %126 = vmatpush1.msra.mxu0 0.0
    %127 = vmatprep.subr.mxu0 0.0
    %128 = vmatpush1.msra.mxu0 0.0
    %129 = vmatprep.subr.mxu0 0.0
    %130 = vmatpush1.msra.mxu0 0.0
    %131 = vmatprep.subr.mxu0 0.0
    %132 = vmatpush1.msra.mxu0 0.0
    %133 = vmatprep.subr.mxu0 0.0
    %134 = vmatpush1.msra.mxu0 0.0
    %135 = vmatprep.mubr.f32.mxu0 0.0
    %136 = vmatmul.mubr.f32.gmra.mrb[0].mxu0 %v69
    %v137 = vpop.f32.mrb[0].mxu0
    %v138 = vadd.f32 %v66, %v137
    %v139 = vpop.f32.mrb[0].mxu0
    %140 = vdwg.mxu0
    %v141 = vtanh.pop %v138
    %v142 = vld [vmem:[#allocation7] sm:$0xff]
    %v143 = vld [vmem:[#allocation7 + $0x8] sm:$0xff]
    %v144 = vld [vmem:[#allocation7 + $0x10] sm:$0xff]
    %v145 = vld [vmem:[#allocation7 + $0x18] sm:$0xff]
    %v146 = vld [vmem:[#allocation7 + $0x20] sm:$0xff]
    %v147 = vld [vmem:[#allocation7 + $0x28] sm:$0xff]
    %v148 = vld [vmem:[#allocation7 + $0x30] sm:$0xff]
    %v149 = vld [vmem:[#allocation7 + $0x38] sm:$0xff]
    %v150 = vlaneseq
    %v151 = vshrl.u32 %v150, 7
    %v152 = vsub.s32 0, %v151
    %v153 = vrot.slane %v59, %v152
    %vm154 = vcmask 523264
    %v156 = vsel %vm154, %v141, 0
    %158 = vmatprep.subr.mxu0 0.0
    %159 = vmatpush1.msra.mxu0 %v142
    %160 = vmatprep.subr.mxu0 0.0
    %161 = vmatpush1.msra.mxu0 %v143
    %162 = vmatprep.subr.mxu0 0.0
    %163 = vmatpush1.msra.mxu0 %v144
    %164 = vmatprep.subr.mxu0 0.0
    %165 = vmatpush1.msra.mxu0 %v145
    %166 = vmatprep.subr.mxu0 0.0
    %167 = vmatpush1.msra.mxu0 %v146
    %168 = vmatprep.subr.mxu0 0.0
    %169 = vmatpush1.msra.mxu0 %v147
    %170 = vmatprep.subr.mxu0 0.0
    %171 = vmatpush1.msra.mxu0 %v148
    %172 = vmatprep.subr.mxu0 0.0
    %173 = vmatpush1.msra.mxu0 %v149
    %174 = vmatprep.subr.mxu0 0.0
    %175 = vmatpush1.msra.mxu0 0.0
    %176 = vmatprep.subr.mxu0 0.0
    %177 = vmatpush1.msra.mxu0 0.0
    %178 = vmatprep.subr.mxu0 0.0
    %179 = vmatpush1.msra.mxu0 0.0
    %180 = vmatprep.subr.mxu0 0.0
    %181 = vmatpush1.msra.mxu0 0.0
    %182 = vmatprep.subr.mxu0 0.0
    %183 = vmatpush1.msra.mxu0 0.0
    %184 = vmatprep.subr.mxu0 0.0
    %185 = vmatpush1.msra.mxu0 0.0
    %186 = vmatprep.subr.mxu0 0.0
    %187 = vmatpush1.msra.mxu0 0.0
    %188 = vmatprep.subr.mxu0 0.0
    %189 = vmatpush1.msra.mxu0 0.0
    %190 = vmatprep.subr.mxu0 0.0
    %191 = vmatpush1.msra.mxu0 0.0
    %192 = vmatprep.subr.mxu0 0.0
    %193 = vmatpush1.msra.mxu0 0.0
    %194 = vmatprep.subr.mxu0 0.0
    %195 = vmatpush1.msra.mxu0 0.0
    %196 = vmatprep.subr.mxu0 0.0
    %197 = vmatpush1.msra.mxu0 0.0
    %198 = vmatprep.subr.mxu0 0.0
    %199 = vmatpush1.msra.mxu0 0.0
    %200 = vmatprep.subr.mxu0 0.0
    %201 = vmatpush1.msra.mxu0 0.0
    %202 = vmatprep.subr.mxu0 0.0
    %203 = vmatpush1.msra.mxu0 0.0
    %204 = vmatprep.subr.mxu0 0.0
    %205 = vmatpush1.msra.mxu0 0.0
    %206 = vmatprep.subr.mxu0 0.0
    %207 = vmatpush1.msra.mxu0 0.0
    %208 = vmatprep.subr.mxu0 0.0
    %209 = vmatpush1.msra.mxu0 0.0
    %210 = vmatprep.subr.mxu0 0.0
    %211 = vmatpush1.msra.mxu0 0.0
    %212 = vmatprep.subr.mxu0 0.0
    %213 = vmatpush1.msra.mxu0 0.0
    %214 = vmatprep.subr.mxu0 0.0
    %215 = vmatpush1.msra.mxu0 0.0
    %216 = vmatprep.subr.mxu0 0.0
    %217 = vmatpush1.msra.mxu0 0.0
    %218 = vmatprep.subr.mxu0 0.0
    %219 = vmatpush1.msra.mxu0 0.0
    %220 = vmatprep.subr.mxu0 0.0
    %221 = vmatpush1.msra.mxu0 0.0
    %222 = vmatprep.mubr.f32.mxu0 0.0
    %223 = vmatmul.mubr.f32.gmra.mrb[0].mxu0 %v156
    %v224 = vpop.f32.mrb[0].mxu0
    %v225 = vadd.f32 %v153, %v224
    %v226 = vpop.f32.mrb[0].mxu0
    %227 = vdwg.mxu0
    %v228 = vtanh.pop %v225
    %v229 = vld [vmem:[%s3] sm:$0xff]
    %v231 = vsel %vm154, %v229, 0
    %v234 = vsel %vm154, %v228, 0
    %236 = vmatprep.subr.mxu0 0.0
    %237 = vmatpush1.xpose.msra.mxu0 %v234
    %238 = vmatprep.subr.mxu0 0.0
    %239 = vmatpush1.xpose.msra.mxu0 0.0
    %240 = vmatprep.subr.mxu0 0.0
    %241 = vmatpush1.xpose.msra.mxu0 0.0
    %242 = vmatprep.subr.mxu0 0.0
    %243 = vmatpush1.xpose.msra.mxu0 0.0
    %244 = vmatprep.subr.mxu0 0.0
    %245 = vmatpush1.xpose.msra.mxu0 0.0
    %246 = vmatprep.subr.mxu0 0.0
    %247 = vmatpush1.xpose.msra.mxu0 0.0
    %248 = vmatprep.subr.mxu0 0.0
    %249 = vmatpush1.xpose.msra.mxu0 0.0
    %250 = vmatprep.subr.mxu0 0.0
    %251 = vmatpush1.xpose.msra.mxu0 0.0
    %252 = vmatprep.subr.mxu0 0.0
    %253 = vmatpush1.xpose.msra.mxu0 0.0
    %254 = vmatprep.subr.mxu0 0.0
    %255 = vmatpush1.xpose.msra.mxu0 0.0
    %256 = vmatprep.subr.mxu0 0.0
    %257 = vmatpush1.xpose.msra.mxu0 0.0
    %258 = vmatprep.subr.mxu0 0.0
    %259 = vmatpush1.xpose.msra.mxu0 0.0
    %260 = vmatprep.subr.mxu0 0.0
    %261 = vmatpush1.xpose.msra.mxu0 0.0
    %262 = vmatprep.subr.mxu0 0.0
    %263 = vmatpush1.xpose.msra.mxu0 0.0
    %264 = vmatprep.subr.mxu0 0.0
    %265 = vmatpush1.xpose.msra.mxu0 0.0
    %266 = vmatprep.subr.mxu0 0.0
    %267 = vmatpush1.xpose.msra.mxu0 0.0
    %268 = vmatprep.subr.mxu0 0.0
    %269 = vmatpush1.xpose.msra.mxu0 0.0
    %270 = vmatprep.subr.mxu0 0.0
    %271 = vmatpush1.xpose.msra.mxu0 0.0
    %272 = vmatprep.subr.mxu0 0.0
    %273 = vmatpush1.xpose.msra.mxu0 0.0
    %274 = vmatprep.subr.mxu0 0.0
    %275 = vmatpush1.xpose.msra.mxu0 0.0
    %276 = vmatprep.subr.mxu0 0.0
    %277 = vmatpush1.xpose.msra.mxu0 0.0
    %278 = vmatprep.subr.mxu0 0.0
    %279 = vmatpush1.xpose.msra.mxu0 0.0
    %280 = vmatprep.subr.mxu0 0.0
    %281 = vmatpush1.xpose.msra.mxu0 0.0
    %282 = vmatprep.subr.mxu0 0.0
    %283 = vmatpush1.xpose.msra.mxu0 0.0
    %284 = vmatprep.subr.mxu0 0.0
    %285 = vmatpush1.xpose.msra.mxu0 0.0
    %286 = vmatprep.subr.mxu0 0.0
    %287 = vmatpush1.xpose.msra.mxu0 0.0
    %288 = vmatprep.subr.mxu0 0.0
    %289 = vmatpush1.xpose.msra.mxu0 0.0
    %290 = vmatprep.subr.mxu0 0.0
    %291 = vmatpush1.xpose.msra.mxu0 0.0
    %292 = vmatprep.subr.mxu0 0.0
    %293 = vmatpush1.xpose.msra.mxu0 0.0
    %294 = vmatprep.subr.mxu0 0.0
    %295 = vmatpush1.xpose.msra.mxu0 0.0
    %296 = vmatprep.subr.mxu0 0.0
    %297 = vmatpush1.xpose.msra.mxu0 0.0
    %298 = vmatprep.subr.mxu0 0.0
    %299 = vmatpush1.xpose.msra.mxu0 0.0
    %300 = vmatprep.mubr.f32.mxu0 0.0
    %301 = vmatmul.mubr.f32.gmra.mrb[0].mxu0 %v231
    %v302 = vpop.f32.mrb[0].mxu0
    %v303 = vadd.f32 0.0, %v302
    %v304 = vpop.f32.mrb[0].mxu0
    %305 = vdwg.mxu0
    %307 = vset.pattern.permute.xlu0 0
    %308 = vperm.xlu0 %307, %v60
    %v309 = vpop.permute.xlu0 %308
    %v310 = vrot.slane %v309, 6
    %v312 = vadd.f32 %v303, %v310
    %vm313 = vcmask 59394
    %314 = vst.msk [vmem:[#allocation8 - $0x2] sm:$0x4] %vm313, %v312
    // Predicated region
    $region30: #{tpu_custom_call.1} parent=1 // pred_check
      _
    $region31: #{tpu_custom_call.1} parent=1 // pred_check_branch
      %316 = sbr.rel (0) target = $region33
    $region32: #{tpu_custom_call.1} parent=1 // pred_region
      %s318 = ssub.s32 16, 16
      %319 = vsyncadd [#allocation4], %s318
      %s321 = sshll.u32 [#allocation8], 4
      %s322 = int_to_ptr.vmem [resolvable:$true] %s321
      %324 = dma.vmem_to_hbm [thread:$0]  %s322, 16, %s4, [#allocation4]
    $region33: #{tpu_custom_call.1} parent=1 // pred_fallthru
      _
    // Predicated region
    $region34: #{tpu_custom_call.1} parent=1 // pred_check
      _
    $region35: #{tpu_custom_call.1} parent=1 // pred_check_branch
      %326 = sbr.rel (0) target = $region37
    $region36: #{tpu_custom_call.1} parent=1 // pred_region
      %327 = dma.done [#allocation4], 16
    $region37: #{tpu_custom_call.1} parent=1 // pred_fallthru
      _
    %328 = vsyncpa [#allocation3], 1
    %329 = vsyncpa [#allocation6], 1
    %330 = vsyncpa [#allocation4], 1

</llo_original>
